<compile_context>
chip_gen: v7x
topology: tpu7x:2x2x1
jax: 0.10.0
libtpu: 0.0.40
codegen_flags: <defaults>
</compile_context>

<pallas_src>
import functools

import jax
import jax.numpy as jnp
from jax.experimental import pallas as pl
from jax.experimental.pallas import tpu as pltpu


# ----------------------------- kernels -------------------------------------


def _build_patches(xb, K, dV, padV, L_n, TV, cdt):
    """xb: (C_in, T*V) -> (K*C_in, L_n) im2col operand with zeroed temporal boundary.

    All slice bounds are Python ints (the whole temporal extent is resident in VMEM),
    so boundary handling costs a few small static zero blocks instead of an HBM
    padding pass.
    """
    C_in = xb.shape[0]
    taps = []
    for k in range(K):
        lo = k * dV - padV
        hi = lo + L_n
        a, b = max(lo, 0), min(hi, TV)
        if b <= a:                                   # tap entirely in the zero pad
            taps.append(jnp.zeros((C_in, L_n), cdt))
            continue
        parts = []
        if a - lo:
            parts.append(jnp.zeros((C_in, a - lo), cdt))
        parts.append(xb[:, a:b].astype(cdt))
        if hi - b:
            parts.append(jnp.zeros((C_in, hi - b), cdt))
        taps.append(parts[0] if len(parts) == 1 else jnp.concatenate(parts, axis=1))
    return taps[0] if K == 1 else jnp.concatenate(taps, axis=0)


def _conv_stats_kernel(x_ref, w_ref, st_ref, *, K, dV, padV, L_n, TV):
    """Pass 1: fused conv -> per-channel partial (sum, sum-of-squares) for this block."""
    cdt = w_ref.dtype
    c_out = w_ref.shape[0]
    s1 = jnp.zeros((c_out, 1), jnp.float32)
    s2 = jnp.zeros((c_out, 1), jnp.float32)
    for b in range(x_ref.shape[0]):                  # small static batch-block loop
        xim = _build_patches(x_ref[b], K, dV, padV, L_n, TV, cdt)
        y = jnp.dot(w_ref[...], xim, preferred_element_type=jnp.float32)
        s1 = s1 + jnp.sum(y, axis=1, keepdims=True)
        s2 = s2 + jnp.sum(y * y, axis=1, keepdims=True)
    # NOTE: E[y^2] - E[y]^2 in f32; adequate at these scales (see wrapper comment).
    st_ref[0] = jnp.concatenate([s1, s2], axis=1)    # (C_out, 2)


def _conv_apply_kernel(x_ref, w_ref, s_ref, t_ref, o_ref, *, K, dV, padV, L_n, TV):
    """Pass 2: fused conv + BN affine, stored straight into the (N, C_out, L_n) output."""
    cdt = w_ref.dtype
    for b in range(x_ref.shape[0]):
        xim = _build_patches(x_ref[b], K, dV, padV, L_n, TV, cdt)
        y = jnp.dot(w_ref[...], xim, preferred_element_type=jnp.float32)
        o_ref[b] = (y * s_ref[...] + t_ref[...]).astype(o_ref.dtype)


# ----------------------------- wrapper --------------------------------------


_VMEM_BUDGET = 24 * 1024 * 1024        # stay well inside the 32 MiB scoped limit we set
_TARGET_STEP_BYTES = 1 * 1024 * 1024   # ~1 MB/step reaches the HBM roofline knee


def _per_sample_vmem_bytes(C_in, C_out, K, TV, L_n, in_isz, cdt_isz):
    x_blk = 2 * C_in * TV * in_isz           # double-buffered input block
    o_blk = 2 * C_out * L_n * in_isz         # double-buffered output block
    xim = K * C_in * L_n * cdt_isz           # in-kernel patch operand
    y = 2 * C_out * L_n * 4                  # f32 conv result + affine temp
    return x_blk + o_blk + xim + y


def _choose_batch_block(N, per_sample_bytes):
    """Largest divisor of N within the VMEM budget; stop once the per-step payload is
    big enough, and keep >=2 grid steps when N >= 2 (v7x has two TensorCores)."""
    max_by_mem = max(1, _VMEM_BUDGET // max(per_sample_bytes, 1))
    cap = min(N, max_by_mem, max(1, N // 2) if N >= 2 else 1)
    best = 1
    for d in range(1, cap + 1):
        if N % d == 0:
            best = d
            if d * per_sample_bytes >= _TARGET_STEP_BYTES:
                break
    return best


def temporal_conv_bn(x, weight, bias, gamma, beta, *, stride=1, dilation=1, eps=1e-5):
    """Forward of TemporalConv (training-mode BatchNorm).  x: (N, C_in, T, V)."""
    N, C_in, T, V = x.shape
    C_out, C_in_w, K, kw = weight.shape
    assert C_in_w == C_in and kw == 1
    pad = (K + (K - 1) * (dilation - 1) - 1) // 2

    if stride != 1:
        # TODO(synk): stride>1 breaks the unit-stride flattened view; XLA fallback.
        return _reference(x, weight, bias, gamma, beta,
                          stride=stride, dilation=dilation, eps=eps)

    T_out = T + 2 * pad - dilation * (K - 1)
    TV = T * V
    L_n = T_out * V
    padV = pad * V
    dV = dilation * V

    # bf16 inputs stay bf16 on the MXU (f32 accumulate); everything else computes f32.
    cdt = jnp.bfloat16 if x.dtype == jnp.bfloat16 else jnp.float32
    in_isz = jnp.dtype(x.dtype).itemsize
    per_sample = _per_sample_vmem_bytes(C_in, C_out, K, TV, L_n, in_isz,
                                        jnp.dtype(cdt).itemsize)
    if per_sample > _VMEM_BUDGET:
        # TODO(synk): temporally-tiled variant for very large per-sample working sets.
        return _reference(x, weight, bias, gamma, beta,
                          stride=stride, dilation=dilation, eps=eps)

    B_blk = _choose_batch_block(N, per_sample)
    grid_n = N // B_blk
    grid = (grid_n,)

    xf = x.reshape(N, C_in, TV)                                   # free contiguous view
    # Fold the K taps into one weight matrix: column index = k*C_in + c_in.
    w2 = jnp.transpose(weight[:, :, :, 0], (0, 2, 1)).reshape(C_out, K * C_in).astype(cdt)

    x_spec = pl.BlockSpec((B_blk, C_in, TV), lambda n: (n, 0, 0))
    w_spec = pl.BlockSpec((C_out, K * C_in), lambda n: (0, 0))    # persistent in VMEM
    cparams = pltpu.CompilerParams(dimension_semantics=("parallel",),
                                   vmem_limit_bytes=32 * 1024 * 1024)

    # ---- pass 1: conv + partial BN statistics ----
    stats = pl.pallas_call(
        functools.partial(_conv_stats_kernel, K=K, dV=dV, padV=padV, L_n=L_n, TV=TV),
        grid=grid,
        in_specs=[x_spec, w_spec],
        out_specs=pl.BlockSpec((1, C_out, 2), lambda n: (n, 0, 0)),
        out_shape=jax.ShapeDtypeStruct((grid_n, C_out, 2), jnp.float32),
        compiler_params=cparams,
    )(xf, w2)

    # Tiny reduction + BN affine folding in plain JAX (negligible).
    S = jnp.sum(stats, axis=0)                           # (C_out, 2)
    cnt = float(N * L_n)
    mean = S[:, 0] / cnt                                 # mean of the bias-free conv
    var = jnp.maximum(S[:, 1] / cnt - mean * mean, 0.0)
    inv = jax.lax.rsqrt(var + eps)
    g32 = gamma.astype(jnp.float32)
    scale = (g32 * inv).reshape(C_out, 1)
    # Conv bias cancels exactly against the BN mean, so it never enters the kernels.
    shift = (beta.astype(jnp.float32) - mean * g32 * inv).reshape(C_out, 1)

    # ---- pass 2: conv + fused BN apply, output written directly in NC(T_out*V) ----
    out_flat = pl.pallas_call(
        functools.partial(_conv_apply_kernel, K=K, dV=dV, padV=padV, L_n=L_n, TV=TV),
        grid=grid,
        in_specs=[x_spec, w_spec,
                  pl.BlockSpec((C_out, 1), lambda n: (0, 0)),
                  pl.BlockSpec((C_out, 1), lambda n: (0, 0))],
        out_specs=pl.BlockSpec((B_blk, C_out, L_n), lambda n: (n, 0, 0)),
        out_shape=jax.ShapeDtypeStruct((N, C_out, L_n), x.dtype),
        compiler_params=cparams,
    )(xf, w2, scale, shift)

    return out_flat.reshape(N, C_out, T_out, V)


# ----------------------------- reference ------------------------------------


def _reference(x, weight, bias, gamma, beta, *, stride=1, dilation=1, eps=1e-5):
    """Pure-JAX reference matching PyTorch Conv2d + BatchNorm2d (training mode)."""
    K = weight.shape[2]
    pad = (K + (K - 1) * (dilation - 1) - 1) // 2
    y = jax.lax.conv_general_dilated(
        x, weight,
        window_strides=(stride, 1),
        padding=[(pad, pad), (0, 0)],
        rhs_dilation=(dilation, 1),
        dimension_numbers=("NCHW", "OIHW", "NCHW"),
    )
    y = y + bias.reshape(1, -1, 1, 1)
    mean = jnp.mean(y, axis=(0, 2, 3), keepdims=True)
    var = jnp.mean(jnp.square(y - mean), axis=(0, 2, 3), keepdims=True)
    y = (y - mean) * jax.lax.rsqrt(var + eps)
    return y * gamma.reshape(1, -1, 1, 1) + beta.reshape(1, -1, 1, 1)


if __name__ == "__main__":
    key = jax.random.PRNGKey(0)
    k_x, k_w, k_b, k_g, k_bt, k_x2 = jax.random.split(key, 6)

    # Small shapes consistent with TemporalConv: N=2, C_in=4, C_out=8, T=16, V=16, K=5
    N, C_in, C_out, T, V, K = 2, 4, 8, 16, 16, 5

    x = jax.random.normal(k_x, (N, C_in, T, V), dtype=jnp.float32)
    weight = 0.1 * jax.random.normal(k_w, (C_out, C_in, K, 1), dtype=jnp.float32)
    bias = 0.1 * jax.random.normal(k_b, (C_out,), dtype=jnp.float32)
    gamma = 1.0 + 0.1 * jax.random.normal(k_g, (C_out,), dtype=jnp.float32)
    beta = 0.1 * jax.random.normal(k_bt, (C_out,), dtype=jnp.float32)

    # Case A: kernel_size=5, dilation=1 (left/right temporal zero edges exercised).
    out = temporal_conv_bn(x, weight, bias, gamma, beta)
    out = jax.block_until_ready(out)
    ref = _reference(x, weight, bias, gamma, beta)
    assert out.shape == ref.shape, (out.shape, ref.shape)
    err = float(jnp.max(jnp.abs(out - ref)))
    assert jnp.allclose(out, ref, rtol=1e-4, atol=1e-4), err

    # Case B: odd T and dilation=2 (different pad / tap geometry).
    T2, dil2 = 15, 2
    x2 = jax.random.normal(k_x2, (N, C_in, T2, V), dtype=jnp.float32)
    out2 = temporal_conv_bn(x2, weight, bias, gamma, beta, dilation=dil2)
    out2 = jax.block_until_ready(out2)
    ref2 = _reference(x2, weight, bias, gamma, beta, dilation=dil2)
    assert out2.shape == ref2.shape, (out2.shape, ref2.shape)
    err2 = float(jnp.max(jnp.abs(out2 - ref2)))
    assert jnp.allclose(out2, ref2, rtol=1e-4, atol=1e-4), err2

    print("KERNEL_OK")
</pallas_src>

<mosaic_0001>
module attributes {stable_mosaic.version = 11 : i64} {
  func.func @_conv_stats_kernel(%arg0: i32, %arg1: memref<1x4x256xf32, #tpu.memory_space<vmem>>, %arg2: memref<8x20xf32, #tpu.memory_space<vmem>>, %arg3: memref<1x8x2xf32, #tpu.memory_space<vmem>>) attributes {dimension_semantics = [#tpu.dimension_semantics<parallel>], iteration_bounds = array<i64: 2>, scalar_prefetch = 0 : i64, scratch_operands = 0 : i64, tpu.core_type = #tpu.core_type<tc>, window_params = [{transform_indices = @transform_0, window_bounds = array<i64: 1, 4, 256>}, {pipeline_mode = #tpu.pipeline_mode<synchronous>, transform_indices = @transform_1, window_bounds = array<i64: 8, 20>}, {transform_indices = @transform_2, window_bounds = array<i64: 1, 8, 2>}]} {
    %cst = arith.constant 0.000000e+00 : f32
    %0 = vector.broadcast %cst : f32 to vector<8x1xf32>
    %cst_0 = arith.constant 0.000000e+00 : f32
    %1 = vector.broadcast %cst_0 : f32 to vector<8x1xf32>
    %c0 = arith.constant 0 : index
    %c0_1 = arith.constant 0 : index
    %c0_2 = arith.constant 0 : index
    %2 = vector.load %arg1[%c0, %c0_1, %c0_2] : memref<1x4x256xf32, #tpu.memory_space<vmem>>, vector<1x4x256xf32>
    %3 = vector.shape_cast %2 : vector<1x4x256xf32> to vector<4x256xf32>
    %cst_3 = arith.constant 0.000000e+00 : f32
    %4 = vector.broadcast %cst_3 : f32 to vector<4x32xf32>
    %5 = vector.extract_strided_slice %3 {offsets = [0, 0], sizes = [4, 224], strides = [1, 1]} : vector<4x256xf32> to vector<4x224xf32>
    %6 = tpu.concatenate %4, %5 in 1 : vector<4x32xf32>, vector<4x224xf32> -> vector<4x256xf32>
    %cst_4 = arith.constant 0.000000e+00 : f32
    %7 = vector.broadcast %cst_4 : f32 to vector<4x16xf32>
    %8 = vector.extract_strided_slice %3 {offsets = [0, 0], sizes = [4, 240], strides = [1, 1]} : vector<4x256xf32> to vector<4x240xf32>
    %9 = tpu.concatenate %7, %8 in 1 : vector<4x16xf32>, vector<4x240xf32> -> vector<4x256xf32>
    %10 = vector.extract_strided_slice %3 {offsets = [0, 16], sizes = [4, 240], strides = [1, 1]} : vector<4x256xf32> to vector<4x240xf32>
    %cst_5 = arith.constant 0.000000e+00 : f32
    %11 = vector.broadcast %cst_5 : f32 to vector<4x16xf32>
    %12 = tpu.concatenate %10, %11 in 1 : vector<4x240xf32>, vector<4x16xf32> -> vector<4x256xf32>
    %13 = vector.extract_strided_slice %3 {offsets = [0, 32], sizes = [4, 224], strides = [1, 1]} : vector<4x256xf32> to vector<4x224xf32>
    %cst_6 = arith.constant 0.000000e+00 : f32
    %14 = vector.broadcast %cst_6 : f32 to vector<4x32xf32>
    %15 = tpu.concatenate %13, %14 in 1 : vector<4x224xf32>, vector<4x32xf32> -> vector<4x256xf32>
    %16 = tpu.concatenate %6, %9, %3, %12, %15 in 0 : vector<4x256xf32>, vector<4x256xf32>, vector<4x256xf32>, vector<4x256xf32>, vector<4x256xf32> -> vector<20x256xf32>
    %c0_7 = arith.constant 0 : index
    %c0_8 = arith.constant 0 : index
    %17 = vector.load %arg2[%c0_7, %c0_8] : memref<8x20xf32, #tpu.memory_space<vmem>>, vector<8x20xf32>
    %cst_9 = arith.constant dense<0.000000e+00> : vector<8x256xf32>
    %18 = tpu.matmul %17, %16, %cst_9 {dimension_numbers = #tpu.dot_dimension_numbers<[1], [0], [0], [1], [0, 0, 1, 1], [], []>} : vector<8x20xf32>, vector<20x256xf32>, vector<8x256xf32> -> vector<8x256xf32>
    %cst_10 = arith.constant dense<0.000000e+00> : vector<8xf32>
    %19 = vector.multi_reduction <add>, %18, %cst_10 [1] : vector<8x256xf32> to vector<8xf32>
    %20 = vector.shape_cast %19 : vector<8xf32> to vector<8x1xf32>
    %21 = arith.addf %0, %20 : vector<8x1xf32>
    %22 = arith.mulf %18, %18 : vector<8x256xf32>
    %cst_11 = arith.constant dense<0.000000e+00> : vector<8xf32>
    %23 = vector.multi_reduction <add>, %22, %cst_11 [1] : vector<8x256xf32> to vector<8xf32>
    %24 = vector.shape_cast %23 : vector<8xf32> to vector<8x1xf32>
    %25 = arith.addf %1, %24 : vector<8x1xf32>
    %26 = tpu.concatenate %21, %25 in 1 : vector<8x1xf32>, vector<8x1xf32> -> vector<8x2xf32>
    %c0_12 = arith.constant 0 : index
    %c0_13 = arith.constant 0 : index
    %c0_14 = arith.constant 0 : index
    %27 = vector.load %arg3[%c0_12, %c0_13, %c0_14] : memref<1x8x2xf32, #tpu.memory_space<vmem>>, vector<1x8x2xf32>
    %28 = vector.shape_cast %27 : vector<1x8x2xf32> to vector<8x2xf32>
    %29 = vector.shape_cast %26 : vector<8x2xf32> to vector<1x8x2xf32>
    tpu.vector_store %arg3[%c0_12, %c0_13, %c0_14], %29 {strides = array<i32>} : memref<1x8x2xf32, #tpu.memory_space<vmem>>, vector<1x8x2xf32>,
    return
  }
  func.func @transform_0(%arg0: i32) -> (i32, i32, i32) {
    %c0_i32 = arith.constant 0 : i32
    %c0_i32_0 = arith.constant 0 : i32
    %c0_i32_1 = arith.constant 0 : i32
    return %arg0, %c0_i32, %c0_i32_0 : i32, i32, i32
  }
  func.func @transform_1(%arg0: i32) -> (i32, i32) {
    %c0_i32 = arith.constant 0 : i32
    %c0_i32_0 = arith.constant 0 : i32
    %c0_i32_1 = arith.constant 0 : i32
    return %c0_i32, %c0_i32_0 : i32, i32
  }
  func.func @transform_2(%arg0: i32) -> (i32, i32, i32) {
    %c0_i32 = arith.constant 0 : i32
    %c0_i32_0 = arith.constant 0 : i32
    %c0_i32_1 = arith.constant 0 : i32
    return %arg0, %c0_i32, %c0_i32_0 : i32, i32, i32
  }
}

</mosaic_0001>

<llo_original>
// kernel: tpu_custom_call.1
$region0: #{tpu_custom_call.1}
  #allocation0 [shape = 'u32[]', space=smem, size = 0x4, offset = 0x4, fixed_abs, tag = 'smem constant byte address 0x4 - core index']
  #allocation1 [shape = 'u32[144,128]{1,0:T(1,128)}', space=vmem, size = 0x12000, scoped, tag = 'internal scratch']
  %s0 = inlined_call_operand.hbm [shape: f32[2,4,256], index: 0, kind: input, shape index: {}]
  %s1 = inlined_call_operand.hbm [shape: f32[8,20], index: 1, kind: input, shape index: {}]
  %s2 = inlined_call_operand.vmem [shape: f32[2,8,2], index: 2, kind: output, shape index: {}]
  %s3 = sld [smem:[#allocation0]]
  $region49: #{tpu_custom_call.1} parent=0
    _
  %s5 = ssub.s32 1, %s3
  %s6 = scalar_select 0, %s5, %s3
  $region1: #{tpu_custom_call.1} parent=0
    #allocation2 [shape = 'u8[8192]{0}', space=vmem, size = 0x2000, scoped, tag = 'input window, operand 0']
    #allocation3 [shape = 's32[2]{0}', space=sflag, size = 0x8, scoped, tag = 'scoped memory for tpu_custom_call.1']
    #allocation4 [shape = 'u8[4096]{0}', space=vmem, size = 0x1000, scoped, tag = 'input window, operand 1, single buffered']
    #allocation5 [shape = 's32[1]{0}', space=sflag, size = 0x4, scoped, tag = 'scoped memory for tpu_custom_call.1']
    %7 = vsyncpa [#allocation3], 0
    %s8 = scalar_lea.sflag [#allocation3], 1
    %9 = vsyncpa %s8, 0
    %10 = vsyncpa [#allocation5], 0
    loop: start=0, step=1, limit=4
    $region2: #{tpu_custom_call.1} parent=1 // loop_pre_header
      _
    $region3: #{tpu_custom_call.1} parent=1 // loop_header
      %s12 = sphi 0, %s16
      %p13 = scmp.ge.s32.totalorder %s12, 4
      %s22 = sphi 0, %s24
      %s25 = sphi 0, %s22
      %s26 = sphi 0, %s25
      %s42 = sphi 0, %s26
      %s46 = sphi 0, %s46
      %s48 = sphi 0, %s46
      %s49 = sphi 0, %s48
      %s63 = sphi 0, %s49
      %s69 = sphi 0, %s71
      %s72 = sphi 0, %s69
      %s73 = sphi 0, %s72
      %s89 = sphi 0, %s73
    $region4: #{tpu_custom_call.1} parent=1 // loop_header_branch
      %15 = sbr.rel (%p13) target = $region8
    $region5: #{tpu_custom_call.1} parent=1 // loop_body
      %s17 = ssub.s32 %s12, 1
      %s18 = ssub.s32 %s12, 2
      %s19 = sadd.s32 %s12, 1
      %s20 = ssub.s32 %s12, %s19
      %p21 = scmp.eq.s32.totalorder %s20, 0
      %s23 = sadd.s32 %s22, 1
      %s24 = scalar_select %p21, %s22, %s23
      %p27 = pneg %p21
      %p28 = scmp.eq.s32.totalorder %s12, 1
      %p29 = por %p27, %p28
      %p30 = scmp.ne.s32.totalorder %s22, %s25
      %p31 = scmp.eq.s32.totalorder %s12, 0
      %p32 = por %p30, %p31
      %p33 = scmp.ne.s32.totalorder %s22, %s25
      %p34 = scmp.eq.s32.totalorder %s17, 1
      %p35 = por %p33, %p34
      %p36 = scmp.ne.s32.totalorder %s25, %s26
      %p37 = scmp.eq.s32.totalorder %s17, 0
      %p38 = por %p36, %p37
      %p39 = scmp.ne.s32.totalorder %s25, %s26
      %p40 = scmp.eq.s32.totalorder %s18, 1
      %p41 = por %p39, %p40
      %p43 = scmp.ne.s32.totalorder %s26, %s42
      %p44 = scmp.eq.s32.totalorder %s18, 0
      %p45 = por %p43, %p44
      %s47 = sadd.s32 %s46, 1
      %p50 = scmp.eq.s32.totalorder %s12, 1
      %p51 = scmp.ne.s32.totalorder %s46, %s48
      %p52 = scmp.eq.s32.totalorder %s12, 0
      %p53 = por %p51, %p52
      %p54 = scmp.ne.s32.totalorder %s46, %s48
      %p55 = scmp.eq.s32.totalorder %s17, 1
      %p56 = por %p54, %p55
      %p57 = scmp.ne.s32.totalorder %s48, %s49
      %p58 = scmp.eq.s32.totalorder %s17, 0
      %p59 = por %p57, %p58
      %p60 = scmp.ne.s32.totalorder %s48, %s49
      %p61 = scmp.eq.s32.totalorder %s18, 1
      %p62 = por %p60, %p61
      %p64 = scmp.ne.s32.totalorder %s49, %s63
      %p65 = scmp.eq.s32.totalorder %s18, 0
      %p66 = por %p64, %p65
      %s67 = ssub.s32 %s12, %s19
      %p68 = scmp.eq.s32.totalorder %s67, 0
      %s70 = sadd.s32 %s69, 1
      %s71 = scalar_select %p68, %s69, %s70
      %p74 = pneg %p68
      %p75 = scmp.eq.s32.totalorder %s12, 1
      %p76 = por %p74, %p75
      %p77 = scmp.ne.s32.totalorder %s69, %s72
      %p78 = scmp.eq.s32.totalorder %s12, 0
      %p79 = por %p77, %p78
      %p80 = scmp.ne.s32.totalorder %s69, %s72
      %p81 = scmp.eq.s32.totalorder %s17, 1
      %p82 = por %p80, %p81
      %p83 = scmp.ne.s32.totalorder %s72, %s73
      %p84 = scmp.eq.s32.totalorder %s17, 0
      %p85 = por %p83, %p84
      %p86 = scmp.ne.s32.totalorder %s72, %s73
      %p87 = scmp.eq.s32.totalorder %s18, 1
      %p88 = por %p86, %p87
      %p90 = scmp.ne.s32.totalorder %s73, %s89
      %p91 = scmp.eq.s32.totalorder %s18, 0
      %p92 = por %p90, %p91
      %p93 = scmp.le.s32.totalorder 1, %s12
      %p94 = scmp.lt.s32.totalorder %s12, 3
      %p95 = pnand %p93, %p94
      %p96 = pneg %p95
      // Predicated region
      $region9: #{tpu_custom_call.1} parent=5 // pred_check
        _
      $region10: #{tpu_custom_call.1} parent=5 // pred_check_branch
        %98 = sbr.rel (%p95) target = $region12
      $region11: #{tpu_custom_call.1} parent=5 // pred_region
        %s99 = ssub.s32 %s12, 1
        // Predicated region
        $region13: #{tpu_custom_call.1} parent=11 // pred_check
          %p100 = pneg %p59
        $region14: #{tpu_custom_call.1} parent=11 // pred_check_branch
          %102 = sbr.rel (%p100) target = $region16
        $region15: #{tpu_custom_call.1} parent=11 // pred_region
          %s104 = ssub.s32 128, 128
          %105 = vsyncadd [#allocation5], %s104
          %s107 = sshll.u32 [#allocation4], 4
          %s108 = int_to_ptr.vmem [resolvable:$true] %s107
          %110 = dma.hbm_to_vmem [thread:$0]  %s1, 128, %s108, [#allocation5]
        $region16: #{tpu_custom_call.1} parent=11 // pred_fallthru
          _
      $region12: #{tpu_custom_call.1} parent=5 // pred_fallthru
        _
      %p111 = scmp.lt.s32.totalorder %s12, 2
      // Predicated region
      $region17: #{tpu_custom_call.1} parent=5 // pred_check
        %p112 = pneg %p111
      $region18: #{tpu_custom_call.1} parent=5 // pred_check_branch
        %114 = sbr.rel (%p112) target = $region20
      $region19: #{tpu_custom_call.1} parent=5 // pred_region
        // Predicated region
        $region21: #{tpu_custom_call.1} parent=19 // pred_check
          %p115 = pneg %p32
        $region22: #{tpu_custom_call.1} parent=19 // pred_check_branch
          %117 = sbr.rel (%p115) target = $region24
        $region23: #{tpu_custom_call.1} parent=19 // pred_region
          %s118 = sand.u32 %s22, 1
          %s119 = scalar_lea.sflag [#allocation3], %s118
          %s120 = sand.u32 %s22, 1
          %s121 = smul.addr %s120, 8
          %s122 = scalar_lea.vmem [#allocation2], %s121
          %s124 = ssub.s32 128, 128
          %125 = vsyncadd %s119, %s124
          %s126 = smul.addr %s12, 2
          %s127 = smul.addr %s126, 64
          %s128 = scalar_lea.hbm %s0, %s127
          %s130 = sshll.u32 %s122, 4
          %s131 = int_to_ptr.vmem [resolvable:$true] %s130
          %133 = dma.hbm_to_vmem [thread:$0]  %s128, 128, %s131, %s119
        $region24: #{tpu_custom_call.1} parent=19 // pred_fallthru
          _
      $region20: #{tpu_custom_call.1} parent=5 // pred_fallthru
        _
      %p134 = scmp.le.s32.totalorder 1, %s12
      %p135 = scmp.lt.s32.totalorder %s12, 3
      %p136 = pnand %p134, %p135
      %p137 = pneg %p136
      // Predicated region
      $region25: #{tpu_custom_call.1} parent=5 // pred_check
        _
      $region26: #{tpu_custom_call.1} parent=5 // pred_check_branch
        %139 = sbr.rel (%p136) target = $region28
      $region27: #{tpu_custom_call.1} parent=5 // pred_region
        %s140 = ssub.s32 %s12, 1
        %s141 = sand.u32 %s25, 1
        %s142 = scalar_lea.sflag [#allocation3], %s141
        %s143 = sand.u32 %s25, 1
        %s144 = smul.addr %s143, 8
        %s145 = scalar_lea.vmem [#allocation2], %s144
        // Predicated region
        $region29: #{tpu_custom_call.1} parent=27 // pred_check
          %p146 = pneg %p38
        $region30: #{tpu_custom_call.1} parent=27 // pred_check_branch
          %148 = sbr.rel (%p146) target = $region32
        $region31: #{tpu_custom_call.1} parent=27 // pred_region
          %149 = dma.done %s142, 128
        $region32: #{tpu_custom_call.1} parent=27 // pred_fallthru
          _
        // Predicated region
        $region33: #{tpu_custom_call.1} parent=27 // pred_check
          %p150 = pneg %p59
        $region34: #{tpu_custom_call.1} parent=27 // pred_check_branch
          %152 = sbr.rel (%p150) target = $region36
        $region35: #{tpu_custom_call.1} parent=27 // pred_region
          %153 = dma.done [#allocation5], 128
        $region36: #{tpu_custom_call.1} parent=27 // pred_fallthru
          _
        %s154 = sand.u32 %s25, 1
        %s155 = scalar_lea.sflag [#allocation3], %s154
        %s156 = sand.u32 %s25, 1
        %s157 = smul.addr %s156, 8
        %s158 = scalar_lea.vmem [#allocation2], %s157
        %p159 = pneg %p38
        %p160 = pneg %p35
        %p161 = pneg %p59
        %p162 = pneg %p56
        %p163 = pneg %p85
        %p164 = pneg %p82
        %p165 = scmp.lt.s32.totalorder %s17, 1
        %s166 = scalar_select %p165, %s17, 1
        %s167 = smul.addr %s166, 8
        %s168 = scalar_lea.vmem %s2, %s167
        %p169 = scmp.lt.s32.totalorder %s17, 1
        %s170 = scalar_select %p169, %s17, 1
        %s171 = smul.addr %s170, 8
        %s172 = scalar_lea.vmem %s2, %s171
        %v173 = vld [vmem:[%s145] sm:$0xff]
        %v175 = vcombine.high %v173, %v173
        %176 = vrot.lane.b32.xlu0 %v173, 32
        %v177 = vpop.permute.xlu0 %176
        %178 = vrot.lane.b32.xlu0 %v175, 32
        %v179 = vpop.permute.xlu0 %178
        %vm180 = vcmask 261120
        %v181 = vsel %vm180, %v177, %v179
        %v184 = vsel %vm180, 0.0, %v177
        %185 = vrot.lane.b32.xlu0 %v173, 16
        %v186 = vpop.permute.xlu0 %185
        %187 = vrot.lane.b32.xlu0 %v175, 16
        %v188 = vpop.permute.xlu0 %187
        %vm189 = vcmask 130048
        %v190 = vsel %vm189, %v186, %v188
        %v192 = vsel %vm189, 0.0, %v186
        %193 = vrot.lane.b32.xlu0 %v173, 112
        %v194 = vpop.permute.xlu0 %193
        %195 = vrot.lane.b32.xlu0 %v175, 112
        %v196 = vpop.permute.xlu0 %195
        %vm197 = vcmask 916480
        %v198 = vsel %vm197, %v194, %v196
        %v200 = vsel %vm197, %v196, 0.0
        %201 = vrot.lane.b32.xlu0 %v173, 96
        %v202 = vpop.permute.xlu0 %201
        %203 = vrot.lane.b32.xlu0 %v175, 96
        %v204 = vpop.permute.xlu0 %203
        %vm205 = vcmask 785408
        %v206 = vsel %vm205, %v202, %v204
        %v208 = vsel %vm205, %v204, 0.0
        %v210 = vrot.slane %v192, 4
        %v211 = vrot.slane %v190, 4
        %v216 = vrot.slane %v198, 4
        %v217 = vrot.slane %v200, 4
        %vm220 = vcmask 1043456
        %v221 = vsel %vm220, %v184, %v210
        %v222 = vsel %vm220, %v181, %v211
        %v223 = vsel %vm220, %v173, %v216
        %v224 = vsel %vm220, %v175, %v217
        %v225 = vld [vmem:[#allocation4] sm:$0xff]
        %vm226 = vcmask 162816
        %v228 = vsel %vm226, %v225, 0
        %v230 = vsel %vm220, %v206, 0
        %v233 = vsel %vm220, %v208, 0
        %235 = vmatprep.subr.mxu0 %v222
        %236 = vmatpush1.msra.mxu0 %v221
        %237 = vmatprep.subr.mxu0 %v224
        %238 = vmatpush1.msra.mxu0 %v223
        %239 = vmatprep.subr.mxu0 %v233
        %240 = vmatpush1.msra.mxu0 %v230
        %241 = vmatprep.subr.mxu0 0.0
        %242 = vmatpush1.msra.mxu0 0.0
        %243 = vmatprep.subr.mxu0 0.0
        %244 = vmatpush1.msra.mxu0 0.0
        %245 = vmatprep.subr.mxu0 0.0
        %246 = vmatpush1.msra.mxu0 0.0
        %247 = vmatprep.subr.mxu0 0.0
        %248 = vmatpush1.msra.mxu0 0.0
        %249 = vmatprep.subr.mxu0 0.0
        %250 = vmatpush1.msra.mxu0 0.0
        %251 = vmatprep.subr.mxu0 0.0
        %252 = vmatpush1.msra.mxu0 0.0
        %253 = vmatprep.subr.mxu0 0.0
        %254 = vmatpush1.msra.mxu0 0.0
        %255 = vmatprep.subr.mxu0 0.0
        %256 = vmatpush1.msra.mxu0 0.0
        %257 = vmatprep.subr.mxu0 0.0
        %258 = vmatpush1.msra.mxu0 0.0
        %259 = vmatprep.subr.mxu0 0.0
        %260 = vmatpush1.msra.mxu0 0.0
        %261 = vmatprep.subr.mxu0 0.0
        %262 = vmatpush1.msra.mxu0 0.0
        %263 = vmatprep.subr.mxu0 0.0
        %264 = vmatpush1.msra.mxu0 0.0
        %265 = vmatprep.subr.mxu0 0.0
        %266 = vmatpush1.msra.mxu0 0.0
        %267 = vmatprep.subr.mxu0 0.0
        %268 = vmatpush1.msra.mxu0 0.0
        %269 = vmatprep.subr.mxu0 0.0
        %270 = vmatpush1.msra.mxu0 0.0
        %271 = vmatprep.subr.mxu0 0.0
        %272 = vmatpush1.msra.mxu0 0.0
        %273 = vmatprep.subr.mxu0 0.0
        %274 = vmatpush1.msra.mxu0 0.0
        %275 = vmatprep.subr.mxu0 0.0
        %276 = vmatpush1.msra.mxu0 0.0
        %277 = vmatprep.subr.mxu0 0.0
        %278 = vmatpush1.msra.mxu0 0.0
        %279 = vmatprep.subr.mxu0 0.0
        %280 = vmatpush1.msra.mxu0 0.0
        %281 = vmatprep.subr.mxu0 0.0
        %282 = vmatpush1.msra.mxu0 0.0
        %283 = vmatprep.subr.mxu0 0.0
        %284 = vmatpush1.msra.mxu0 0.0
        %285 = vmatprep.subr.mxu0 0.0
        %286 = vmatpush1.msra.mxu0 0.0
        %287 = vmatprep.subr.mxu0 0.0
        %288 = vmatpush1.msra.mxu0 0.0
        %289 = vmatprep.subr.mxu0 0.0
        %290 = vmatpush1.msra.mxu0 0.0
        %291 = vmatprep.subr.mxu0 0.0
        %292 = vmatpush1.msra.mxu0 0.0
        %293 = vmatprep.subr.mxu0 0.0
        %294 = vmatpush1.msra.mxu0 0.0
        %295 = vmatprep.subr.mxu0 0.0
        %296 = vmatpush1.msra.mxu0 0.0
        %297 = vmatprep.subr.mxu0 0.0
        %298 = vmatpush1.msra.mxu0 0.0
        %299 = vmatprep.mubr.f32.mxu0 0.0
        %300 = vmatmul.mubr.f32.gmra.mrb[0].mxu0 %v228
        %v301 = vpop.f32.mrb[0].mxu0
        %v302 = vadd.f32 0.0, %v301
        %v303 = vpop.f32.mrb[0].mxu0
        %v304 = vadd.f32 0.0, %v303
        %305 = vdwg.mxu0
        %v306 = vadd.f32 %v302, %v304
        %307 = vadd.xlane.f32.xlu0 %v306
        %v308 = vpop.xlane.xlu0 %307
        %v309 = vadd.f32 %v308, 0.0
        %v310 = vmul.f32 %v302, %v302
        %v311 = vmul.f32 %v304, %v304
        %v312 = vadd.f32 %v310, %v311
        %313 = vadd.xlane.f32.xlu0 %v312
        %v314 = vpop.xlane.xlu0 %313
        %v315 = vadd.f32 %v314, 0.0
        %vm316 = vcmask 7168
        %v317 = vsel %vm316, %v309, %v315
        %vm318 = vcmask 15360
        %319 = vst.msk [vmem:[%s172] sm:$0xff] %vm318, %v317
        %p320 = scmp.lt.s32.totalorder %s17, 1
        %s321 = scalar_select %p320, %s17, 1
        %s322 = smul.addr %s321, 8
        %s323 = scalar_lea.vmem %s2, %s322
        // Predicated region
        $region37: #{tpu_custom_call.1} parent=27 // pred_check
          %p324 = pneg %p82
        $region38: #{tpu_custom_call.1} parent=27 // pred_check_branch
          %326 = sbr.rel (%p324) target = $region40
        $region39: #{tpu_custom_call.1} parent=27 // pred_region
          _
        $region40: #{tpu_custom_call.1} parent=27 // pred_fallthru
          _
      $region28: #{tpu_custom_call.1} parent=5 // pred_fallthru
        _
      %p327 = scmp.le.s32.totalorder 2, %s12
      // Predicated region
      $region41: #{tpu_custom_call.1} parent=5 // pred_check
        %p328 = pneg %p327
      $region42: #{tpu_custom_call.1} parent=5 // pred_check_branch
        %330 = sbr.rel (%p328) target = $region44
      $region43: #{tpu_custom_call.1} parent=5 // pred_region
        %s331 = ssub.s32 %s12, 2
        // Predicated region
        $region45: #{tpu_custom_call.1} parent=43 // pred_check
          %p332 = pneg %p88
        $region46: #{tpu_custom_call.1} parent=43 // pred_check_branch
          %334 = sbr.rel (%p332) target = $region48
        $region47: #{tpu_custom_call.1} parent=43 // pred_region
          %p335 = scmp.lt.s32.totalorder %s18, 1
          %s336 = scalar_select %p335, %s18, 1
          %s337 = smul.addr %s336, 8
          %s338 = scalar_lea.vmem %s2, %s337
        $region48: #{tpu_custom_call.1} parent=43 // pred_fallthru
          _
      $region44: #{tpu_custom_call.1} parent=5 // pred_fallthru
        _
    $region6: #{tpu_custom_call.1} parent=1 // loop_footer
      %s16 = sadd.s32 1, %s12
    $region7: #{tpu_custom_call.1} parent=1 // loop_footer_branch
      %11 = sbr.rel target = $region3
    $region8: #{tpu_custom_call.1} parent=1 // loop_exit
      _
    %339 = vsyncpa [#allocation3], 1
    %s340 = scalar_lea.sflag [#allocation3], 1
    %341 = vsyncpa %s340, 1
    %342 = vsyncpa [#allocation5], 1

</llo_original>
